<compile_context>
chip_gen: v7x
topology: tpu7x:2x2x1
jax: 0.10.0
libtpu: 0.0.40
codegen_flags: <defaults>
</compile_context>

<pallas_src>
import functools

import jax
import jax.numpy as jnp
from jax.experimental import pallas as pl
from jax.experimental.pallas import tpu as pltpu

ALPHA = 2.0  # fixed in the PyTorch module's __init__


def _round_up(v, m):
    return (v + m - 1) // m * m


def _recip(x):
    """EUP approximate reciprocal + one Newton-Raphson step (~f32 accuracy)."""
    r = pl.reciprocal(x, approx=True)
    return r * (2.0 - x * r)


def _clustering_kernel(x_ref, c_ref, cn_ref, q_ref, *, alpha, n_clusters, s_tile):
    """One (batch-tile, S-tile) grid step.

    x_ref:  (s_tile, F, tB)   streamed input slab (batch in the lane dim)
    c_ref:  (Sp, Kp, F)       VMEM-resident centroids (full extent)
    cn_ref: (Sp, Kp, 1) f32   precomputed centroid squared norms
    q_ref:  (Kp, tB)  f32     output; doubles as the running distance sum
    """
    s_step = pl.program_id(1)

    @pl.when(s_step == 0)
    def _():
        q_ref[...] = jnp.zeros_like(q_ref)

    start = pl.multiple_of(s_step * s_tile, s_tile)
    x = x_ref[...]                                    # (ts, F, tB)
    c = c_ref[pl.ds(start, s_tile), :, :]             # (ts, Kp, F)
    cn = cn_ref[pl.ds(start, s_tile), :, :]           # (ts, Kp, 1)

    # Cross term: canonical batched matmul on the MXU, f32 accumulation.
    # Output (ts, Kp, tB) -> batch tile fills the output lanes.
    cross = jnp.einsum('skf,sfb->skb', c, x,
                       preferred_element_type=jnp.float32)

    xf = x.astype(jnp.float32)
    xn = jnp.sum(xf * xf, axis=1)[:, None, :]         # (ts, 1, tB)

    # ||x-c||^2; clamp fp cancellation to avoid sqrt of tiny negatives.
    d2 = jnp.maximum(xn + cn - 2.0 * cross, 0.0)      # (ts, Kp, tB)

    # Per-s Euclidean norm, reduced over this S tile (major-axis VPU adds),
    # accumulated directly into the revisited output block.
    q_ref[...] += jnp.sum(jnp.sqrt(d2), axis=0)       # (Kp, tB)

    @pl.when(s_step == pl.num_programs(1) - 1)
    def _():
        dist = q_ref[...]                              # (Kp, tB)
        q = _recip(1.0 + dist * dist * (1.0 / alpha))  # 1/(1 + d^2/alpha)
        if alpha == 2.0:            # exponent alpha+1 == 3 (module fixes alpha)
            q = q * q * q
        else:                       # generic path (never traced for alpha=2.0)
            q = q ** (alpha + 1.0)
        # Padded clusters must not contribute to the row normalization.
        kidx = jax.lax.broadcasted_iota(jnp.int32, q.shape, 0)
        q = jnp.where(kidx < n_clusters, q, 0.0)
        # The reference's "/ 2.0" cancels exactly in the normalization.
        denom = jnp.sum(q, axis=0, keepdims=True)      # (1, tB)
        q_ref[...] = q * _recip(denom)


def clustering_forward(x, centroids, *, alpha=ALPHA, block_b=256, block_s=512):
    """x: (B, S, F, 1), centroids: (1, K, S, F)  ->  q: (B, K) float32."""
    B, S, F, _ = x.shape
    one, K, Sc, Fc = centroids.shape
    assert one == 1 and (S, F) == (Sc, Fc)

    # Batch tile: lane dim -> multiple of 128; prefer >= 2 blocks so the
    # "parallel" grid axis can occupy both TensorCores on v7x megacore.
    b_lanes = _round_up(B, 128)
    if b_lanes >= 256:
        tb = min(block_b, _round_up(b_lanes // 2, 128))
    else:
        tb = b_lanes
    bp = _round_up(B, tb)

    # S tile: sublane-aligned so the resident centroid-norm slices stay dense.
    ts = min(block_s, _round_up(S, 8))
    sp = _round_up(S, ts)

    # Pad clusters to a sublane multiple; masked out of the normalization.
    kp = _round_up(K, 8)

    # TODO(synk): on HBM-bound v5e, fuse this transpose into the producer (or
    # consume x in natural (B,S,F) order with an s-folded 128-lane minor dim)
    # to avoid one extra read+write pass over x in HBM.
    xs = jnp.transpose(x.reshape(B, S, F), (1, 2, 0))              # (S, F, B)
    xs = jnp.pad(xs, ((0, sp - S), (0, 0), (0, bp - B)))

    cs = jnp.transpose(centroids.reshape(K, S, F), (1, 0, 2))      # (S, K, F)
    cs = jnp.pad(cs, ((0, sp - S), (0, kp - K), (0, 0)))           # (sp, kp, F)

    # Centroid squared norms precomputed once, shaped for lane broadcast.
    cn = jnp.sum(cs.astype(jnp.float32) ** 2, axis=-1, keepdims=True)  # (sp,kp,1)

    # Zero padding is exact: padded s rows contribute ||0-0|| = 0; padded
    # batch lanes / cluster rows are sliced off (or masked) below.
    grid = (bp // tb, sp // ts)  # (parallel batch axis, arbitrary S axis)

    q = pl.pallas_call(
        functools.partial(_clustering_kernel, alpha=float(alpha),
                          n_clusters=K, s_tile=ts),
        out_shape=jax.ShapeDtypeStruct((kp, bp), jnp.float32),
        grid_spec=pltpu.PrefetchScalarGridSpec(
            num_scalar_prefetch=0,
            grid=grid,
            in_specs=[
                # Streamed x slab: batch tile in the lane dim (no lane pad).
                pl.BlockSpec((ts, F, tb), lambda i, s: (s, 0, i)),
                # Centroids + their norms: full-extent, VMEM-resident.
                pl.BlockSpec((sp, kp, F), lambda i, s: (0, 0, 0)),
                pl.BlockSpec((sp, kp, 1), lambda i, s: (0, 0, 0)),
            ],
            out_specs=pl.BlockSpec((kp, tb), lambda i, s: (0, i)),
        ),
        compiler_params=pltpu.CompilerParams(
            dimension_semantics=("parallel", "arbitrary"),
            # Double-buffered x tile (2 x ts*F*tb*4) + matmul/d2 temporaries +
            # resident centroids stay well under v7x's 64 MiB physical VMEM.
            vmem_limit_bytes=56 * 1024 * 1024,
        ),
    )(xs, cs, cn)

    return jnp.transpose(q[:K, :B])   # (B, K)


def clustering_reference(x, centroids, alpha=ALPHA):
    """Pure-JAX port of the PyTorch forward (kept faithful, incl. the /2)."""
    B = x.shape[0]
    v = x.reshape(B, 1, x.shape[1], -1)
    diff = v - centroids
    dist = jnp.sqrt(jnp.sum(diff ** 2, axis=3))
    dist = jnp.sum(dist, axis=2)
    q = 1.0 / (1.0 + dist ** 2 / alpha)
    q = q ** (alpha + 1.0) / 2.0
    q = q / jnp.sum(q, axis=1, keepdims=True)
    return q


if __name__ == "__main__":
    # Shapes consistent with the module's forward:
    #   x: [batch, seq_len, feature_num, 1], centroids: [1, n_clusters, seq_len, feature_num]
    batch, n_clusters, seq_len, feature_num = 2, 4, 8, 16

    key = jax.random.PRNGKey(0)
    kx, kc = jax.random.split(key)
    x = jax.random.normal(kx, (batch, seq_len, feature_num, 1), dtype=jnp.float32)
    centroids = jax.random.uniform(
        kc, (1, n_clusters, seq_len, feature_num), dtype=jnp.float32)

    q = jax.block_until_ready(clustering_forward(x, centroids))
    q_ref = clustering_reference(x, centroids)

    assert q.shape == (batch, n_clusters)
    assert bool(jnp.all(jnp.isfinite(q)))
    # Soft assignments must sum to 1 per row and match the reference.
    assert jnp.allclose(jnp.sum(q, axis=1), 1.0, atol=1e-4)
    assert jnp.allclose(q, q_ref, atol=1e-4, rtol=1e-4), (q, q_ref)

    print("KERNEL_OK")
</pallas_src>

<mosaic_0001>
module attributes {stable_mosaic.version = 11 : i64} {
  func.func @_clustering_kernel(%arg0: i32, %arg1: i32, %arg2: memref<8x16x128xf32, #tpu.memory_space<vmem>>, %arg3: memref<8x8x16xf32, #tpu.memory_space<vmem>>, %arg4: memref<8x8x1xf32, #tpu.memory_space<vmem>>, %arg5: memref<8x128xf32, #tpu.memory_space<vmem>>) attributes {dimension_semantics = [#tpu.dimension_semantics<parallel>, #tpu.dimension_semantics<arbitrary>], iteration_bounds = array<i64: 1, 1>, scalar_prefetch = 0 : i64, scratch_operands = 0 : i64, tpu.core_type = #tpu.core_type<tc>, window_params = [{transform_indices = @transform_0, window_bounds = array<i64: 8, 16, 128>}, {pipeline_mode = #tpu.pipeline_mode<synchronous>, transform_indices = @transform_1, window_bounds = array<i64: 8, 8, 16>}, {pipeline_mode = #tpu.pipeline_mode<synchronous>, transform_indices = @transform_2, window_bounds = array<i64: 8, 8, 1>}, {transform_indices = @transform_3, window_bounds = array<i64: 8, 128>}]} {
    %c0_i32 = arith.constant 0 : i32
    %0 = arith.cmpi eq, %arg1, %c0_i32 : i32
    %1 = arith.extui %0 : i1 to i32
    %c0_i32_0 = arith.constant 0 : i32
    %2 = arith.cmpi ne, %1, %c0_i32_0 : i32
    scf.if %2 {
      %cst_17 = arith.constant 0.000000e+00 : f32
      %30 = vector.broadcast %cst_17 : f32 to vector<8x128xf32>
      %c0_18 = arith.constant 0 : index
      %c0_19 = arith.constant 0 : index
      %31 = vector.load %arg5[%c0_18, %c0_19] : memref<8x128xf32, #tpu.memory_space<vmem>>, vector<8x128xf32>
      tpu.vector_store %arg5[%c0_18, %c0_19], %30 {strides = array<i32>} : memref<8x128xf32, #tpu.memory_space<vmem>>, vector<8x128xf32>,
    } else {
    }
    %c8_i32 = arith.constant 8 : i32
    %3 = arith.muli %arg1, %c8_i32 : i32
    %4 = tpu.assume_multiple %3, 8 : i32
    %c0 = arith.constant 0 : index
    %c0_1 = arith.constant 0 : index
    %c0_2 = arith.constant 0 : index
    %5 = vector.load %arg2[%c0, %c0_1, %c0_2] : memref<8x16x128xf32, #tpu.memory_space<vmem>>, vector<8x16x128xf32>
    %6 = arith.index_cast %4 : i32 to index
    %c0_3 = arith.constant 0 : index
    %c0_4 = arith.constant 0 : index
    %7 = vector.load %arg3[%6, %c0_3, %c0_4] : memref<8x8x16xf32, #tpu.memory_space<vmem>>, vector<8x8x16xf32>
    %8 = arith.index_cast %4 : i32 to index
    %c0_5 = arith.constant 0 : index
    %c0_6 = arith.constant 0 : index
    %9 = vector.load %arg4[%8, %c0_5, %c0_6] : memref<8x8x1xf32, #tpu.memory_space<vmem>>, vector<8x8x1xf32>
    "tpu.trace_start"() <{level = 10 : i32, message = "skf,sfb->skb"}> : () -> ()
    %cst = arith.constant dense<0.000000e+00> : vector<8x8x128xf32>
    %10 = tpu.matmul %7, %5, %cst {dimension_numbers = #tpu.dot_dimension_numbers<[2], [1], [1], [2], [0, 0, 0, 1, 1, 2], [0], [0]>} : vector<8x8x16xf32>, vector<8x16x128xf32>, vector<8x8x128xf32> -> vector<8x8x128xf32>
    "tpu.trace_stop"() : () -> ()
    %11 = arith.mulf %5, %5 : vector<8x16x128xf32>
    %cst_7 = arith.constant dense<0.000000e+00> : vector<8x128xf32>
    %12 = vector.multi_reduction <add>, %11, %cst_7 [1] : vector<8x16x128xf32> to vector<8x128xf32>
    %13 = vector.shape_cast %12 : vector<8x128xf32> to vector<8x1x128xf32>
    %14 = vector.broadcast %13 : vector<8x1x128xf32> to vector<8x8x128xf32>
    %15 = vector.broadcast %9 : vector<8x8x1xf32> to vector<8x8x128xf32>
    %16 = arith.addf %14, %15 : vector<8x8x128xf32>
    %cst_8 = arith.constant 2.000000e+00 : f32
    %17 = vector.broadcast %cst_8 : f32 to vector<8x8x128xf32>
    %18 = arith.mulf %17, %10 : vector<8x8x128xf32>
    %19 = arith.subf %16, %18 : vector<8x8x128xf32>
    %cst_9 = arith.constant 0.000000e+00 : f32
    %20 = vector.broadcast %cst_9 : f32 to vector<8x8x128xf32>
    %21 = arith.maximumf %19, %20 : vector<8x8x128xf32>
    %c0_10 = arith.constant 0 : index
    %c0_11 = arith.constant 0 : index
    %22 = vector.load %arg5[%c0_10, %c0_11] : memref<8x128xf32, #tpu.memory_space<vmem>>, vector<8x128xf32>
    %23 = math.sqrt %21 : vector<8x8x128xf32>
    %cst_12 = arith.constant dense<0.000000e+00> : vector<8x128xf32>
    %24 = vector.multi_reduction <add>, %23, %cst_12 [0] : vector<8x8x128xf32> to vector<8x128xf32>
    %25 = arith.addf %22, %24 : vector<8x128xf32>
    %c0_13 = arith.constant 0 : index
    %c0_14 = arith.constant 0 : index
    %26 = vector.load %arg5[%c0_13, %c0_14] : memref<8x128xf32, #tpu.memory_space<vmem>>, vector<8x128xf32>
    tpu.vector_store %arg5[%c0_13, %c0_14], %25 {strides = array<i32>} : memref<8x128xf32, #tpu.memory_space<vmem>>, vector<8x128xf32>,
    %c0_i32_15 = arith.constant 0 : i32
    %27 = arith.cmpi eq, %arg1, %c0_i32_15 : i32
    %28 = arith.extui %27 : i1 to i32
    %c0_i32_16 = arith.constant 0 : i32
    %29 = arith.cmpi ne, %28, %c0_i32_16 : i32
    scf.if %29 {
      %c0_17 = arith.constant 0 : index
      %c0_18 = arith.constant 0 : index
      %30 = vector.load %arg5[%c0_17, %c0_18] : memref<8x128xf32, #tpu.memory_space<vmem>>, vector<8x128xf32>
      %31 = arith.mulf %30, %30 : vector<8x128xf32>
      %cst_19 = arith.constant 5.000000e-01 : f32
      %32 = vector.broadcast %cst_19 : f32 to vector<8x128xf32>
      %33 = arith.mulf %31, %32 : vector<8x128xf32>
      %cst_20 = arith.constant 1.000000e+00 : f32
      %34 = vector.broadcast %cst_20 : f32 to vector<8x128xf32>
      %35 = arith.addf %34, %33 : vector<8x128xf32>
      %36 = tpu.reciprocal %35 {approx = true} : vector<8x128xf32> -> vector<8x128xf32>
      %37 = arith.mulf %35, %36 : vector<8x128xf32>
      %cst_21 = arith.constant 2.000000e+00 : f32
      %38 = vector.broadcast %cst_21 : f32 to vector<8x128xf32>
      %39 = arith.subf %38, %37 : vector<8x128xf32>
      %40 = arith.mulf %36, %39 : vector<8x128xf32>
      %41 = arith.mulf %40, %40 : vector<8x128xf32>
      %42 = arith.mulf %41, %40 : vector<8x128xf32>
      %43 = tpu.iota {dimensions = array<i32: 0>} : vector<8x128xi32>
      %c4_i32 = arith.constant 4 : i32
      %44 = vector.broadcast %c4_i32 : i32 to vector<8x128xi32>
      %45 = arith.cmpi slt, %43, %44 : vector<8x128xi32>
      %cst_22 = arith.constant 0.000000e+00 : f32
      %46 = vector.broadcast %cst_22 : f32 to vector<8x128xf32>
      %47 = arith.select %45, %42, %46 : vector<8x128xi1>, vector<8x128xf32>
      %cst_23 = arith.constant dense<0.000000e+00> : vector<128xf32>
      %48 = vector.multi_reduction <add>, %47, %cst_23 [0] : vector<8x128xf32> to vector<128xf32>
      %49 = vector.shape_cast %48 : vector<128xf32> to vector<1x128xf32>
      %50 = tpu.reciprocal %49 {approx = true} : vector<1x128xf32> -> vector<1x128xf32>
      %51 = arith.mulf %49, %50 : vector<1x128xf32>
      %cst_24 = arith.constant 2.000000e+00 : f32
      %52 = vector.broadcast %cst_24 : f32 to vector<1x128xf32>
      %53 = arith.subf %52, %51 : vector<1x128xf32>
      %54 = arith.mulf %50, %53 : vector<1x128xf32>
      %55 = vector.broadcast %54 : vector<1x128xf32> to vector<8x128xf32>
      %56 = arith.mulf %47, %55 : vector<8x128xf32>
      %c0_25 = arith.constant 0 : index
      %c0_26 = arith.constant 0 : index
      %57 = vector.load %arg5[%c0_25, %c0_26] : memref<8x128xf32, #tpu.memory_space<vmem>>, vector<8x128xf32>
      tpu.vector_store %arg5[%c0_25, %c0_26], %56 {strides = array<i32>} : memref<8x128xf32, #tpu.memory_space<vmem>>, vector<8x128xf32>,
    } else {
    }
    return
  }
  func.func @transform_0(%arg0: i32, %arg1: i32) -> (i32, i32, i32) {
    %c0_i32 = arith.constant 0 : i32
    %c0_i32_0 = arith.constant 0 : i32
    return %arg1, %c0_i32, %arg0 : i32, i32, i32
  }
  func.func @transform_1(%arg0: i32, %arg1: i32) -> (i32, i32, i32) {
    %c0_i32 = arith.constant 0 : i32
    %c0_i32_0 = arith.constant 0 : i32
    %c0_i32_1 = arith.constant 0 : i32
    %c0_i32_2 = arith.constant 0 : i32
    return %c0_i32, %c0_i32_0, %c0_i32_1 : i32, i32, i32
  }
  func.func @transform_2(%arg0: i32, %arg1: i32) -> (i32, i32, i32) {
    %c0_i32 = arith.constant 0 : i32
    %c0_i32_0 = arith.constant 0 : i32
    %c0_i32_1 = arith.constant 0 : i32
    %c0_i32_2 = arith.constant 0 : i32
    return %c0_i32, %c0_i32_0, %c0_i32_1 : i32, i32, i32
  }
  func.func @transform_3(%arg0: i32, %arg1: i32) -> (i32, i32) {
    %c0_i32 = arith.constant 0 : i32
    %c0_i32_0 = arith.constant 0 : i32
    return %c0_i32, %arg0 : i32, i32
  }
}

</mosaic_0001>

<llo_original>
// kernel: tpu_custom_call.1
$region0: #{tpu_custom_call.1}
  #allocation0 [shape = 'u32[]', space=smem, size = 0x4, offset = 0x4, fixed_abs, tag = 'smem constant byte address 0x4 - core index']
  #allocation1 [shape = 'u32[144,128]{1,0:T(1,128)}', space=vmem, size = 0x12000, scoped, tag = 'internal scratch']
  %s0 = inlined_call_operand.hbm [shape: f32[8,16,128], index: 0, kind: input, shape index: {}]
  %s1 = inlined_call_operand.vmem [shape: f32[8,8,16], index: 1, kind: input, shape index: {}]
  %s2 = inlined_call_operand.vmem [shape: f32[8,8,1], index: 2, kind: input, shape index: {}]
  %s3 = inlined_call_operand.hbm [shape: f32[8,128], index: 3, kind: output, shape index: {}]
  %s4 = sld [smem:[#allocation0]]
  $region34: #{tpu_custom_call.1} parent=0
    _
  %s6 = ssub.s32 1, %s4
  %s7 = scalar_select 0, %s6, %s4
  $region1: #{tpu_custom_call.1} parent=0
    #allocation2 [shape = 'u8[65536]{0}', space=vmem, size = 0x10000, scoped, tag = 'input window, operand 0, single buffered']
    #allocation3 [shape = 's32[1]{0}', space=sflag, size = 0x4, scoped, tag = 'scoped memory for tpu_custom_call.1']
    #allocation4 [shape = 's32[1]{0}', space=sflag, size = 0x4, scoped, tag = 'scoped memory for tpu_custom_call.1']
    #allocation5 [shape = 'u8[4096]{0}', space=vmem, size = 0x1000, scoped, tag = 'output window, operand 0, single buffered']
    %8 = vsyncpa [#allocation3], 0
    %9 = vsyncpa [#allocation4], 0
    // Predicated region
    $region2: #{tpu_custom_call.1} parent=1 // pred_check
      _
    $region3: #{tpu_custom_call.1} parent=1 // pred_check_branch
      %11 = sbr.rel (0) target = $region5
    $region4: #{tpu_custom_call.1} parent=1 // pred_region
      %s13 = ssub.s32 2048, 2048
      %14 = vsyncadd [#allocation3], %s13
      %s15 = sshll.u32 [#allocation2], 4
      %s16 = int_to_ptr.vmem [resolvable:$true] %s15
      %21 = dma.hbm_to_vmem [thread:$0]  %s0, 2048, %s16, [#allocation3], 128, 128, 8
    $region5: #{tpu_custom_call.1} parent=1 // pred_fallthru
      _
    // Predicated region
    $region6: #{tpu_custom_call.1} parent=1 // pred_check
      _
    $region7: #{tpu_custom_call.1} parent=1 // pred_check_branch
      %23 = sbr.rel (0) target = $region9
    $region8: #{tpu_custom_call.1} parent=1 // pred_region
      _
    $region9: #{tpu_custom_call.1} parent=1 // pred_fallthru
      _
    // Predicated region
    $region10: #{tpu_custom_call.1} parent=1 // pred_check
      _
    $region11: #{tpu_custom_call.1} parent=1 // pred_check_branch
      %25 = sbr.rel (0) target = $region13
    $region12: #{tpu_custom_call.1} parent=1 // pred_region
      _
    $region13: #{tpu_custom_call.1} parent=1 // pred_fallthru
      _
    // Predicated region
    $region14: #{tpu_custom_call.1} parent=1 // pred_check
      _
    $region15: #{tpu_custom_call.1} parent=1 // pred_check_branch
      %27 = sbr.rel (0) target = $region17
    $region16: #{tpu_custom_call.1} parent=1 // pred_region
      %28 = dma.done [#allocation3], 2048
    $region17: #{tpu_custom_call.1} parent=1 // pred_fallthru
      _
    %p29 = scmp.eq.s32.totalorder 0, 0
    // Predicated region
    $region18: #{tpu_custom_call.1} parent=1 // pred_check
      %p30 = pneg %p29
    $region19: #{tpu_custom_call.1} parent=1 // pred_check_branch
      %32 = sbr.rel (%p30) target = $region21
    $region20: #{tpu_custom_call.1} parent=1 // pred_region
      %33 = vst [vmem:[#allocation5] sm:$0xff] 0.0
    $region21: #{tpu_custom_call.1} parent=1 // pred_fallthru
      _
    %s34 = smul.u32 0, 8
    %v35 = vld [vmem:[#allocation2] sm:$0xff]
    %v36 = vld [vmem:[#allocation2 + $0x8] sm:$0xff]
    %v37 = vld [vmem:[#allocation2 + $0x10] sm:$0xff]
    %v38 = vld [vmem:[#allocation2 + $0x18] sm:$0xff]
    %v39 = vld [vmem:[#allocation2 + $0x20] sm:$0xff]
    %v40 = vld [vmem:[#allocation2 + $0x28] sm:$0xff]
    %v41 = vld [vmem:[#allocation2 + $0x30] sm:$0xff]
    %v42 = vld [vmem:[#allocation2 + $0x38] sm:$0xff]
    %v43 = vld [vmem:[#allocation2 + $0x40] sm:$0xff]
    %v44 = vld [vmem:[#allocation2 + $0x48] sm:$0xff]
    %v45 = vld [vmem:[#allocation2 + $0x50] sm:$0xff]
    %v46 = vld [vmem:[#allocation2 + $0x58] sm:$0xff]
    %v47 = vld [vmem:[#allocation2 + $0x60] sm:$0xff]
    %v48 = vld [vmem:[#allocation2 + $0x68] sm:$0xff]
    %v49 = vld [vmem:[#allocation2 + $0x70] sm:$0xff]
    %v50 = vld [vmem:[#allocation2 + $0x78] sm:$0xff]
    %s51 = smul.u32 %s34, 8
    %s52 = scalar_lea.vmem %s1, %s51
    %v53 = vld [vmem:[%s52] sm:$0xff]
    %v54 = vld [vmem:[%s52 + $0x8] sm:$0xff]
    %v55 = vld [vmem:[%s52 + $0x10] sm:$0xff]
    %v56 = vld [vmem:[%s52 + $0x18] sm:$0xff]
    %v57 = vld [vmem:[%s52 + $0x20] sm:$0xff]
    %v58 = vld [vmem:[%s52 + $0x28] sm:$0xff]
    %v59 = vld [vmem:[%s52 + $0x30] sm:$0xff]
    %v60 = vld [vmem:[%s52 + $0x38] sm:$0xff]
    %s61 = scalar_lea.vmem %s2, %s51
    %v62 = vld [vmem:[%s61] sm:$0xff]
    %v63 = vld [vmem:[%s61 + $0x8] sm:$0xff]
    %v64 = vld [vmem:[%s61 + $0x10] sm:$0xff]
    %v65 = vld [vmem:[%s61 + $0x18] sm:$0xff]
    %v66 = vld [vmem:[%s61 + $0x20] sm:$0xff]
    %v67 = vld [vmem:[%s61 + $0x28] sm:$0xff]
    %v68 = vld [vmem:[%s61 + $0x30] sm:$0xff]
    %v69 = vld [vmem:[%s61 + $0x38] sm:$0xff]
    %vm70 = vcmask 130048
    %v72 = vsel %vm70, %v53, 0
    %74 = vmatprep.subr.mxu0 0.0
    %75 = vmatpush1.msra.mxu0 %v35
    %76 = vmatprep.subr.mxu0 0.0
    %77 = vmatpush1.msra.mxu0 %v36
    %78 = vmatprep.subr.mxu0 0.0
    %79 = vmatpush1.msra.mxu0 0.0
    %80 = vmatprep.subr.mxu0 0.0
    %81 = vmatpush1.msra.mxu0 0.0
    %82 = vmatprep.subr.mxu0 0.0
    %83 = vmatpush1.msra.mxu0 0.0
    %84 = vmatprep.subr.mxu0 0.0
    %85 = vmatpush1.msra.mxu0 0.0
    %86 = vmatprep.subr.mxu0 0.0
    %87 = vmatpush1.msra.mxu0 0.0
    %88 = vmatprep.subr.mxu0 0.0
    %89 = vmatpush1.msra.mxu0 0.0
    %90 = vmatprep.subr.mxu0 0.0
    %91 = vmatpush1.msra.mxu0 0.0
    %92 = vmatprep.subr.mxu0 0.0
    %93 = vmatpush1.msra.mxu0 0.0
    %94 = vmatprep.subr.mxu0 0.0
    %95 = vmatpush1.msra.mxu0 0.0
    %96 = vmatprep.subr.mxu0 0.0
    %97 = vmatpush1.msra.mxu0 0.0
    %98 = vmatprep.subr.mxu0 0.0
    %99 = vmatpush1.msra.mxu0 0.0
    %100 = vmatprep.subr.mxu0 0.0
    %101 = vmatpush1.msra.mxu0 0.0
    %102 = vmatprep.subr.mxu0 0.0
    %103 = vmatpush1.msra.mxu0 0.0
    %104 = vmatprep.subr.mxu0 0.0
    %105 = vmatpush1.msra.mxu0 0.0
    %106 = vmatprep.subr.mxu0 0.0
    %107 = vmatpush1.msra.mxu0 0.0
    %108 = vmatprep.subr.mxu0 0.0
    %109 = vmatpush1.msra.mxu0 0.0
    %110 = vmatprep.subr.mxu0 0.0
    %111 = vmatpush1.msra.mxu0 0.0
    %112 = vmatprep.subr.mxu0 0.0
    %113 = vmatpush1.msra.mxu0 0.0
    %114 = vmatprep.subr.mxu0 0.0
    %115 = vmatpush1.msra.mxu0 0.0
    %116 = vmatprep.subr.mxu0 0.0
    %117 = vmatpush1.msra.mxu0 0.0
    %118 = vmatprep.subr.mxu0 0.0
    %119 = vmatpush1.msra.mxu0 0.0
    %120 = vmatprep.subr.mxu0 0.0
    %121 = vmatpush1.msra.mxu0 0.0
    %122 = vmatprep.subr.mxu0 0.0
    %123 = vmatpush1.msra.mxu0 0.0
    %124 = vmatprep.subr.mxu0 0.0
    %125 = vmatpush1.msra.mxu0 0.0
    %126 = vmatprep.subr.mxu0 0.0
    %127 = vmatpush1.msra.mxu0 0.0
    %128 = vmatprep.subr.mxu0 0.0
    %129 = vmatpush1.msra.mxu0 0.0
    %130 = vmatprep.subr.mxu0 0.0
    %131 = vmatpush1.msra.mxu0 0.0
    %132 = vmatprep.subr.mxu0 0.0
    %133 = vmatpush1.msra.mxu0 0.0
    %134 = vmatprep.subr.mxu0 0.0
    %135 = vmatpush1.msra.mxu0 0.0
    %136 = vmatprep.subr.mxu0 0.0
    %137 = vmatpush1.msra.mxu0 0.0
    %138 = vmatprep.mubr.f32.mxu0 0.0
    %139 = vmatmul.mubr.f32.gmra.mrb[0].mxu0 %v72
    %v140 = vpop.f32.mrb[0].mxu0
    %v141 = vadd.f32 0.0, %v140
    %v142 = vpop.f32.mrb[0].mxu0
    %143 = vdwg.mxu0
    %v145 = vsel %vm70, %v54, 0
    %147 = vmatprep.subr.mxu0 0.0
    %148 = vmatpush1.msra.mxu0 %v37
    %149 = vmatprep.subr.mxu0 0.0
    %150 = vmatpush1.msra.mxu0 %v38
    %151 = vmatprep.subr.mxu0 0.0
    %152 = vmatpush1.msra.mxu0 0.0
    %153 = vmatprep.subr.mxu0 0.0
    %154 = vmatpush1.msra.mxu0 0.0
    %155 = vmatprep.subr.mxu0 0.0
    %156 = vmatpush1.msra.mxu0 0.0
    %157 = vmatprep.subr.mxu0 0.0
    %158 = vmatpush1.msra.mxu0 0.0
    %159 = vmatprep.subr.mxu0 0.0
    %160 = vmatpush1.msra.mxu0 0.0
    %161 = vmatprep.subr.mxu0 0.0
    %162 = vmatpush1.msra.mxu0 0.0
    %163 = vmatprep.subr.mxu0 0.0
    %164 = vmatpush1.msra.mxu0 0.0
    %165 = vmatprep.subr.mxu0 0.0
    %166 = vmatpush1.msra.mxu0 0.0
    %167 = vmatprep.subr.mxu0 0.0
    %168 = vmatpush1.msra.mxu0 0.0
    %169 = vmatprep.subr.mxu0 0.0
    %170 = vmatpush1.msra.mxu0 0.0
    %171 = vmatprep.subr.mxu0 0.0
    %172 = vmatpush1.msra.mxu0 0.0
    %173 = vmatprep.subr.mxu0 0.0
    %174 = vmatpush1.msra.mxu0 0.0
    %175 = vmatprep.subr.mxu0 0.0
    %176 = vmatpush1.msra.mxu0 0.0
    %177 = vmatprep.subr.mxu0 0.0
    %178 = vmatpush1.msra.mxu0 0.0
    %179 = vmatprep.subr.mxu0 0.0
    %180 = vmatpush1.msra.mxu0 0.0
    %181 = vmatprep.subr.mxu0 0.0
    %182 = vmatpush1.msra.mxu0 0.0
    %183 = vmatprep.subr.mxu0 0.0
    %184 = vmatpush1.msra.mxu0 0.0
    %185 = vmatprep.subr.mxu0 0.0
    %186 = vmatpush1.msra.mxu0 0.0
    %187 = vmatprep.subr.mxu0 0.0
    %188 = vmatpush1.msra.mxu0 0.0
    %189 = vmatprep.subr.mxu0 0.0
    %190 = vmatpush1.msra.mxu0 0.0
    %191 = vmatprep.subr.mxu0 0.0
    %192 = vmatpush1.msra.mxu0 0.0
    %193 = vmatprep.subr.mxu0 0.0
    %194 = vmatpush1.msra.mxu0 0.0
    %195 = vmatprep.subr.mxu0 0.0
    %196 = vmatpush1.msra.mxu0 0.0
    %197 = vmatprep.subr.mxu0 0.0
    %198 = vmatpush1.msra.mxu0 0.0
    %199 = vmatprep.subr.mxu0 0.0
    %200 = vmatpush1.msra.mxu0 0.0
    %201 = vmatprep.subr.mxu0 0.0
    %202 = vmatpush1.msra.mxu0 0.0
    %203 = vmatprep.subr.mxu0 0.0
    %204 = vmatpush1.msra.mxu0 0.0
    %205 = vmatprep.subr.mxu0 0.0
    %206 = vmatpush1.msra.mxu0 0.0
    %207 = vmatprep.subr.mxu0 0.0
    %208 = vmatpush1.msra.mxu0 0.0
    %209 = vmatprep.subr.mxu0 0.0
    %210 = vmatpush1.msra.mxu0 0.0
    %211 = vmatprep.mubr.f32.mxu0 0.0
    %212 = vmatmul.mubr.f32.gmra.mrb[0].mxu0 %v145
    %v213 = vpop.f32.mrb[0].mxu0
    %v214 = vadd.f32 0.0, %v213
    %v215 = vpop.f32.mrb[0].mxu0
    %216 = vdwg.mxu0
    %v218 = vsel %vm70, %v55, 0
    %220 = vmatprep.subr.mxu0 0.0
    %221 = vmatpush1.msra.mxu0 %v39
    %222 = vmatprep.subr.mxu0 0.0
    %223 = vmatpush1.msra.mxu0 %v40
    %224 = vmatprep.subr.mxu0 0.0
    %225 = vmatpush1.msra.mxu0 0.0
    %226 = vmatprep.subr.mxu0 0.0
    %227 = vmatpush1.msra.mxu0 0.0
    %228 = vmatprep.subr.mxu0 0.0
    %229 = vmatpush1.msra.mxu0 0.0
    %230 = vmatprep.subr.mxu0 0.0
    %231 = vmatpush1.msra.mxu0 0.0
    %232 = vmatprep.subr.mxu0 0.0
    %233 = vmatpush1.msra.mxu0 0.0
    %234 = vmatprep.subr.mxu0 0.0
    %235 = vmatpush1.msra.mxu0 0.0
    %236 = vmatprep.subr.mxu0 0.0
    %237 = vmatpush1.msra.mxu0 0.0
    %238 = vmatprep.subr.mxu0 0.0
    %239 = vmatpush1.msra.mxu0 0.0
    %240 = vmatprep.subr.mxu0 0.0
    %241 = vmatpush1.msra.mxu0 0.0
    %242 = vmatprep.subr.mxu0 0.0
    %243 = vmatpush1.msra.mxu0 0.0
    %244 = vmatprep.subr.mxu0 0.0
    %245 = vmatpush1.msra.mxu0 0.0
    %246 = vmatprep.subr.mxu0 0.0
    %247 = vmatpush1.msra.mxu0 0.0
    %248 = vmatprep.subr.mxu0 0.0
    %249 = vmatpush1.msra.mxu0 0.0
    %250 = vmatprep.subr.mxu0 0.0
    %251 = vmatpush1.msra.mxu0 0.0
    %252 = vmatprep.subr.mxu0 0.0
    %253 = vmatpush1.msra.mxu0 0.0
    %254 = vmatprep.subr.mxu0 0.0
    %255 = vmatpush1.msra.mxu0 0.0
    %256 = vmatprep.subr.mxu0 0.0
    %257 = vmatpush1.msra.mxu0 0.0
    %258 = vmatprep.subr.mxu0 0.0
    %259 = vmatpush1.msra.mxu0 0.0
    %260 = vmatprep.subr.mxu0 0.0
    %261 = vmatpush1.msra.mxu0 0.0
    %262 = vmatprep.subr.mxu0 0.0
    %263 = vmatpush1.msra.mxu0 0.0
    %264 = vmatprep.subr.mxu0 0.0
    %265 = vmatpush1.msra.mxu0 0.0
    %266 = vmatprep.subr.mxu0 0.0
    %267 = vmatpush1.msra.mxu0 0.0
    %268 = vmatprep.subr.mxu0 0.0
    %269 = vmatpush1.msra.mxu0 0.0
    %270 = vmatprep.subr.mxu0 0.0
    %271 = vmatpush1.msra.mxu0 0.0
    %272 = vmatprep.subr.mxu0 0.0
    %273 = vmatpush1.msra.mxu0 0.0
    %274 = vmatprep.subr.mxu0 0.0
    %275 = vmatpush1.msra.mxu0 0.0
    %276 = vmatprep.subr.mxu0 0.0
    %277 = vmatpush1.msra.mxu0 0.0
    %278 = vmatprep.subr.mxu0 0.0
    %279 = vmatpush1.msra.mxu0 0.0
    %280 = vmatprep.subr.mxu0 0.0
    %281 = vmatpush1.msra.mxu0 0.0
    %282 = vmatprep.subr.mxu0 0.0
    %283 = vmatpush1.msra.mxu0 0.0
    %284 = vmatprep.mubr.f32.mxu0 0.0
    %285 = vmatmul.mubr.f32.gmra.mrb[0].mxu0 %v218
    %v286 = vpop.f32.mrb[0].mxu0
    %v287 = vadd.f32 0.0, %v286
    %v288 = vpop.f32.mrb[0].mxu0
    %289 = vdwg.mxu0
    %v291 = vsel %vm70, %v56, 0
    %293 = vmatprep.subr.mxu0 0.0
    %294 = vmatpush1.msra.mxu0 %v41
    %295 = vmatprep.subr.mxu0 0.0
    %296 = vmatpush1.msra.mxu0 %v42
    %297 = vmatprep.subr.mxu0 0.0
    %298 = vmatpush1.msra.mxu0 0.0
    %299 = vmatprep.subr.mxu0 0.0
    %300 = vmatpush1.msra.mxu0 0.0
    %301 = vmatprep.subr.mxu0 0.0
    %302 = vmatpush1.msra.mxu0 0.0
    %303 = vmatprep.subr.mxu0 0.0
    %304 = vmatpush1.msra.mxu0 0.0
    %305 = vmatprep.subr.mxu0 0.0
    %306 = vmatpush1.msra.mxu0 0.0
    %307 = vmatprep.subr.mxu0 0.0
    %308 = vmatpush1.msra.mxu0 0.0
    %309 = vmatprep.subr.mxu0 0.0
    %310 = vmatpush1.msra.mxu0 0.0
    %311 = vmatprep.subr.mxu0 0.0
    %312 = vmatpush1.msra.mxu0 0.0
    %313 = vmatprep.subr.mxu0 0.0
    %314 = vmatpush1.msra.mxu0 0.0
    %315 = vmatprep.subr.mxu0 0.0
    %316 = vmatpush1.msra.mxu0 0.0
    %317 = vmatprep.subr.mxu0 0.0
    %318 = vmatpush1.msra.mxu0 0.0
    %319 = vmatprep.subr.mxu0 0.0
    %320 = vmatpush1.msra.mxu0 0.0
    %321 = vmatprep.subr.mxu0 0.0
    %322 = vmatpush1.msra.mxu0 0.0
    %323 = vmatprep.subr.mxu0 0.0
    %324 = vmatpush1.msra.mxu0 0.0
    %325 = vmatprep.subr.mxu0 0.0
    %326 = vmatpush1.msra.mxu0 0.0
    %327 = vmatprep.subr.mxu0 0.0
    %328 = vmatpush1.msra.mxu0 0.0
    %329 = vmatprep.subr.mxu0 0.0
    %330 = vmatpush1.msra.mxu0 0.0
    %331 = vmatprep.subr.mxu0 0.0
    %332 = vmatpush1.msra.mxu0 0.0
    %333 = vmatprep.subr.mxu0 0.0
    %334 = vmatpush1.msra.mxu0 0.0
    %335 = vmatprep.subr.mxu0 0.0
    %336 = vmatpush1.msra.mxu0 0.0
    %337 = vmatprep.subr.mxu0 0.0
    %338 = vmatpush1.msra.mxu0 0.0
    %339 = vmatprep.subr.mxu0 0.0
    %340 = vmatpush1.msra.mxu0 0.0
    %341 = vmatprep.subr.mxu0 0.0
    %342 = vmatpush1.msra.mxu0 0.0
    %343 = vmatprep.subr.mxu0 0.0
    %344 = vmatpush1.msra.mxu0 0.0
    %345 = vmatprep.subr.mxu0 0.0
    %346 = vmatpush1.msra.mxu0 0.0
    %347 = vmatprep.subr.mxu0 0.0
    %348 = vmatpush1.msra.mxu0 0.0
    %349 = vmatprep.subr.mxu0 0.0
    %350 = vmatpush1.msra.mxu0 0.0
    %351 = vmatprep.subr.mxu0 0.0
    %352 = vmatpush1.msra.mxu0 0.0
    %353 = vmatprep.subr.mxu0 0.0
    %354 = vmatpush1.msra.mxu0 0.0
    %355 = vmatprep.subr.mxu0 0.0
    %356 = vmatpush1.msra.mxu0 0.0
    %357 = vmatprep.mubr.f32.mxu0 0.0
    %358 = vmatmul.mubr.f32.gmra.mrb[0].mxu0 %v291
    %v359 = vpop.f32.mrb[0].mxu0
    %v360 = vadd.f32 0.0, %v359
    %v361 = vpop.f32.mrb[0].mxu0
    %362 = vdwg.mxu0
    %v364 = vsel %vm70, %v57, 0
    %366 = vmatprep.subr.mxu0 0.0
    %367 = vmatpush1.msra.mxu0 %v43
    %368 = vmatprep.subr.mxu0 0.0
    %369 = vmatpush1.msra.mxu0 %v44
    %370 = vmatprep.subr.mxu0 0.0
    %371 = vmatpush1.msra.mxu0 0.0
    %372 = vmatprep.subr.mxu0 0.0
    %373 = vmatpush1.msra.mxu0 0.0
    %374 = vmatprep.subr.mxu0 0.0
    %375 = vmatpush1.msra.mxu0 0.0
    %376 = vmatprep.subr.mxu0 0.0
    %377 = vmatpush1.msra.mxu0 0.0
    %378 = vmatprep.subr.mxu0 0.0
    %379 = vmatpush1.msra.mxu0 0.0
    %380 = vmatprep.subr.mxu0 0.0
    %381 = vmatpush1.msra.mxu0 0.0
    %382 = vmatprep.subr.mxu0 0.0
    %383 = vmatpush1.msra.mxu0 0.0
    %384 = vmatprep.subr.mxu0 0.0
    %385 = vmatpush1.msra.mxu0 0.0
    %386 = vmatprep.subr.mxu0 0.0
    %387 = vmatpush1.msra.mxu0 0.0
    %388 = vmatprep.subr.mxu0 0.0
    %389 = vmatpush1.msra.mxu0 0.0
    %390 = vmatprep.subr.mxu0 0.0
    %391 = vmatpush1.msra.mxu0 0.0
    %392 = vmatprep.subr.mxu0 0.0
    %393 = vmatpush1.msra.mxu0 0.0
    %394 = vmatprep.subr.mxu0 0.0
    %395 = vmatpush1.msra.mxu0 0.0
    %396 = vmatprep.subr.mxu0 0.0
    %397 = vmatpush1.msra.mxu0 0.0
    %398 = vmatprep.subr.mxu0 0.0
    %399 = vmatpush1.msra.mxu0 0.0
    %400 = vmatprep.subr.mxu0 0.0
    %401 = vmatpush1.msra.mxu0 0.0
    %402 = vmatprep.subr.mxu0 0.0
    %403 = vmatpush1.msra.mxu0 0.0
    %404 = vmatprep.subr.mxu0 0.0
    %405 = vmatpush1.msra.mxu0 0.0
    %406 = vmatprep.subr.mxu0 0.0
    %407 = vmatpush1.msra.mxu0 0.0
    %408 = vmatprep.subr.mxu0 0.0
    %409 = vmatpush1.msra.mxu0 0.0
    %410 = vmatprep.subr.mxu0 0.0
    %411 = vmatpush1.msra.mxu0 0.0
    %412 = vmatprep.subr.mxu0 0.0
    %413 = vmatpush1.msra.mxu0 0.0
    %414 = vmatprep.subr.mxu0 0.0
    %415 = vmatpush1.msra.mxu0 0.0
    %416 = vmatprep.subr.mxu0 0.0
    %417 = vmatpush1.msra.mxu0 0.0
    %418 = vmatprep.subr.mxu0 0.0
    %419 = vmatpush1.msra.mxu0 0.0
    %420 = vmatprep.subr.mxu0 0.0
    %421 = vmatpush1.msra.mxu0 0.0
    %422 = vmatprep.subr.mxu0 0.0
    %423 = vmatpush1.msra.mxu0 0.0
    %424 = vmatprep.subr.mxu0 0.0
    %425 = vmatpush1.msra.mxu0 0.0
    %426 = vmatprep.subr.mxu0 0.0
    %427 = vmatpush1.msra.mxu0 0.0
    %428 = vmatprep.subr.mxu0 0.0
    %429 = vmatpush1.msra.mxu0 0.0
    %430 = vmatprep.mubr.f32.mxu0 0.0
    %431 = vmatmul.mubr.f32.gmra.mrb[0].mxu0 %v364
    %v432 = vpop.f32.mrb[0].mxu0
    %v433 = vadd.f32 0.0, %v432
    %v434 = vpop.f32.mrb[0].mxu0
    %435 = vdwg.mxu0
    %v437 = vsel %vm70, %v58, 0
    %439 = vmatprep.subr.mxu0 0.0
    %440 = vmatpush1.msra.mxu0 %v45
    %441 = vmatprep.subr.mxu0 0.0
    %442 = vmatpush1.msra.mxu0 %v46
    %443 = vmatprep.subr.mxu0 0.0
    %444 = vmatpush1.msra.mxu0 0.0
    %445 = vmatprep.subr.mxu0 0.0
    %446 = vmatpush1.msra.mxu0 0.0
    %447 = vmatprep.subr.mxu0 0.0
    %448 = vmatpush1.msra.mxu0 0.0
    %449 = vmatprep.subr.mxu0 0.0
    %450 = vmatpush1.msra.mxu0 0.0
    %451 = vmatprep.subr.mxu0 0.0
    %452 = vmatpush1.msra.mxu0 0.0
    %453 = vmatprep.subr.mxu0 0.0
    %454 = vmatpush1.msra.mxu0 0.0
    %455 = vmatprep.subr.mxu0 0.0
    %456 = vmatpush1.msra.mxu0 0.0
    %457 = vmatprep.subr.mxu0 0.0
    %458 = vmatpush1.msra.mxu0 0.0
    %459 = vmatprep.subr.mxu0 0.0
    %460 = vmatpush1.msra.mxu0 0.0
    %461 = vmatprep.subr.mxu0 0.0
    %462 = vmatpush1.msra.mxu0 0.0
    %463 = vmatprep.subr.mxu0 0.0
    %464 = vmatpush1.msra.mxu0 0.0
    %465 = vmatprep.subr.mxu0 0.0
    %466 = vmatpush1.msra.mxu0 0.0
    %467 = vmatprep.subr.mxu0 0.0
    %468 = vmatpush1.msra.mxu0 0.0
    %469 = vmatprep.subr.mxu0 0.0
    %470 = vmatpush1.msra.mxu0 0.0
    %471 = vmatprep.subr.mxu0 0.0
    %472 = vmatpush1.msra.mxu0 0.0
    %473 = vmatprep.subr.mxu0 0.0
    %474 = vmatpush1.msra.mxu0 0.0
    %475 = vmatprep.subr.mxu0 0.0
    %476 = vmatpush1.msra.mxu0 0.0
    %477 = vmatprep.subr.mxu0 0.0
    %478 = vmatpush1.msra.mxu0 0.0
    %479 = vmatprep.subr.mxu0 0.0
    %480 = vmatpush1.msra.mxu0 0.0
    %481 = vmatprep.subr.mxu0 0.0
    %482 = vmatpush1.msra.mxu0 0.0
    %483 = vmatprep.subr.mxu0 0.0
    %484 = vmatpush1.msra.mxu0 0.0
    %485 = vmatprep.subr.mxu0 0.0
    %486 = vmatpush1.msra.mxu0 0.0
    %487 = vmatprep.subr.mxu0 0.0
    %488 = vmatpush1.msra.mxu0 0.0
    %489 = vmatprep.subr.mxu0 0.0
    %490 = vmatpush1.msra.mxu0 0.0
    %491 = vmatprep.subr.mxu0 0.0
    %492 = vmatpush1.msra.mxu0 0.0
    %493 = vmatprep.subr.mxu0 0.0
    %494 = vmatpush1.msra.mxu0 0.0
    %495 = vmatprep.subr.mxu0 0.0
    %496 = vmatpush1.msra.mxu0 0.0
    %497 = vmatprep.subr.mxu0 0.0
    %498 = vmatpush1.msra.mxu0 0.0
    %499 = vmatprep.subr.mxu0 0.0
    %500 = vmatpush1.msra.mxu0 0.0
    %501 = vmatprep.subr.mxu0 0.0
    %502 = vmatpush1.msra.mxu0 0.0
    %503 = vmatprep.mubr.f32.mxu0 0.0
    %504 = vmatmul.mubr.f32.gmra.mrb[0].mxu0 %v437
    %v505 = vpop.f32.mrb[0].mxu0
    %v506 = vadd.f32 0.0, %v505
    %v507 = vpop.f32.mrb[0].mxu0
    %508 = vdwg.mxu0
    %v510 = vsel %vm70, %v59, 0
    %512 = vmatprep.subr.mxu0 0.0
    %513 = vmatpush1.msra.mxu0 %v47
    %514 = vmatprep.subr.mxu0 0.0
    %515 = vmatpush1.msra.mxu0 %v48
    %516 = vmatprep.subr.mxu0 0.0
    %517 = vmatpush1.msra.mxu0 0.0
    %518 = vmatprep.subr.mxu0 0.0
    %519 = vmatpush1.msra.mxu0 0.0
    %520 = vmatprep.subr.mxu0 0.0
    %521 = vmatpush1.msra.mxu0 0.0
    %522 = vmatprep.subr.mxu0 0.0
    %523 = vmatpush1.msra.mxu0 0.0
    %524 = vmatprep.subr.mxu0 0.0
    %525 = vmatpush1.msra.mxu0 0.0
    %526 = vmatprep.subr.mxu0 0.0
    %527 = vmatpush1.msra.mxu0 0.0
    %528 = vmatprep.subr.mxu0 0.0
    %529 = vmatpush1.msra.mxu0 0.0
    %530 = vmatprep.subr.mxu0 0.0
    %531 = vmatpush1.msra.mxu0 0.0
    %532 = vmatprep.subr.mxu0 0.0
    %533 = vmatpush1.msra.mxu0 0.0
    %534 = vmatprep.subr.mxu0 0.0
    %535 = vmatpush1.msra.mxu0 0.0
    %536 = vmatprep.subr.mxu0 0.0
    %537 = vmatpush1.msra.mxu0 0.0
    %538 = vmatprep.subr.mxu0 0.0
    %539 = vmatpush1.msra.mxu0 0.0
    %540 = vmatprep.subr.mxu0 0.0
    %541 = vmatpush1.msra.mxu0 0.0
    %542 = vmatprep.subr.mxu0 0.0
    %543 = vmatpush1.msra.mxu0 0.0
    %544 = vmatprep.subr.mxu0 0.0
    %545 = vmatpush1.msra.mxu0 0.0
    %546 = vmatprep.subr.mxu0 0.0
    %547 = vmatpush1.msra.mxu0 0.0
    %548 = vmatprep.subr.mxu0 0.0
    %549 = vmatpush1.msra.mxu0 0.0
    %550 = vmatprep.subr.mxu0 0.0
    %551 = vmatpush1.msra.mxu0 0.0
    %552 = vmatprep.subr.mxu0 0.0
    %553 = vmatpush1.msra.mxu0 0.0
    %554 = vmatprep.subr.mxu0 0.0
    %555 = vmatpush1.msra.mxu0 0.0
    %556 = vmatprep.subr.mxu0 0.0
    %557 = vmatpush1.msra.mxu0 0.0
    %558 = vmatprep.subr.mxu0 0.0
    %559 = vmatpush1.msra.mxu0 0.0
    %560 = vmatprep.subr.mxu0 0.0
    %561 = vmatpush1.msra.mxu0 0.0
    %562 = vmatprep.subr.mxu0 0.0
    %563 = vmatpush1.msra.mxu0 0.0
    %564 = vmatprep.subr.mxu0 0.0
    %565 = vmatpush1.msra.mxu0 0.0
    %566 = vmatprep.subr.mxu0 0.0
    %567 = vmatpush1.msra.mxu0 0.0
    %568 = vmatprep.subr.mxu0 0.0
    %569 = vmatpush1.msra.mxu0 0.0
    %570 = vmatprep.subr.mxu0 0.0
    %571 = vmatpush1.msra.mxu0 0.0
    %572 = vmatprep.subr.mxu0 0.0
    %573 = vmatpush1.msra.mxu0 0.0
    %574 = vmatprep.subr.mxu0 0.0
    %575 = vmatpush1.msra.mxu0 0.0
    %576 = vmatprep.mubr.f32.mxu0 0.0
    %577 = vmatmul.mubr.f32.gmra.mrb[0].mxu0 %v510
    %v578 = vpop.f32.mrb[0].mxu0
    %v579 = vadd.f32 0.0, %v578
    %v580 = vpop.f32.mrb[0].mxu0
    %581 = vdwg.mxu0
    %v583 = vsel %vm70, %v60, 0
    %585 = vmatprep.subr.mxu0 0.0
    %586 = vmatpush1.msra.mxu0 %v49
    %587 = vmatprep.subr.mxu0 0.0
    %588 = vmatpush1.msra.mxu0 %v50
    %589 = vmatprep.subr.mxu0 0.0
    %590 = vmatpush1.msra.mxu0 0.0
    %591 = vmatprep.subr.mxu0 0.0
    %592 = vmatpush1.msra.mxu0 0.0
    %593 = vmatprep.subr.mxu0 0.0
    %594 = vmatpush1.msra.mxu0 0.0
    %595 = vmatprep.subr.mxu0 0.0
    %596 = vmatpush1.msra.mxu0 0.0
    %597 = vmatprep.subr.mxu0 0.0
    %598 = vmatpush1.msra.mxu0 0.0
    %599 = vmatprep.subr.mxu0 0.0
    %600 = vmatpush1.msra.mxu0 0.0
    %601 = vmatprep.subr.mxu0 0.0
    %602 = vmatpush1.msra.mxu0 0.0
    %603 = vmatprep.subr.mxu0 0.0
    %604 = vmatpush1.msra.mxu0 0.0
    %605 = vmatprep.subr.mxu0 0.0
    %606 = vmatpush1.msra.mxu0 0.0
    %607 = vmatprep.subr.mxu0 0.0
    %608 = vmatpush1.msra.mxu0 0.0
    %609 = vmatprep.subr.mxu0 0.0
    %610 = vmatpush1.msra.mxu0 0.0
    %611 = vmatprep.subr.mxu0 0.0
    %612 = vmatpush1.msra.mxu0 0.0
    %613 = vmatprep.subr.mxu0 0.0
    %614 = vmatpush1.msra.mxu0 0.0
    %615 = vmatprep.subr.mxu0 0.0
    %616 = vmatpush1.msra.mxu0 0.0
    %617 = vmatprep.subr.mxu0 0.0
    %618 = vmatpush1.msra.mxu0 0.0
    %619 = vmatprep.subr.mxu0 0.0
    %620 = vmatpush1.msra.mxu0 0.0
    %621 = vmatprep.subr.mxu0 0.0
    %622 = vmatpush1.msra.mxu0 0.0
    %623 = vmatprep.subr.mxu0 0.0
    %624 = vmatpush1.msra.mxu0 0.0
    %625 = vmatprep.subr.mxu0 0.0
    %626 = vmatpush1.msra.mxu0 0.0
    %627 = vmatprep.subr.mxu0 0.0
    %628 = vmatpush1.msra.mxu0 0.0
    %629 = vmatprep.subr.mxu0 0.0
    %630 = vmatpush1.msra.mxu0 0.0
    %631 = vmatprep.subr.mxu0 0.0
    %632 = vmatpush1.msra.mxu0 0.0
    %633 = vmatprep.subr.mxu0 0.0
    %634 = vmatpush1.msra.mxu0 0.0
    %635 = vmatprep.subr.mxu0 0.0
    %636 = vmatpush1.msra.mxu0 0.0
    %637 = vmatprep.subr.mxu0 0.0
    %638 = vmatpush1.msra.mxu0 0.0
    %639 = vmatprep.subr.mxu0 0.0
    %640 = vmatpush1.msra.mxu0 0.0
    %641 = vmatprep.subr.mxu0 0.0
    %642 = vmatpush1.msra.mxu0 0.0
    %643 = vmatprep.subr.mxu0 0.0
    %644 = vmatpush1.msra.mxu0 0.0
    %645 = vmatprep.subr.mxu0 0.0
    %646 = vmatpush1.msra.mxu0 0.0
    %647 = vmatprep.subr.mxu0 0.0
    %648 = vmatpush1.msra.mxu0 0.0
    %649 = vmatprep.mubr.f32.mxu0 0.0
    %650 = vmatmul.mubr.f32.gmra.mrb[0].mxu0 %v583
    %v651 = vpop.f32.mrb[0].mxu0
    %v652 = vadd.f32 0.0, %v651
    %v653 = vpop.f32.mrb[0].mxu0
    %654 = vdwg.mxu0
    %v655 = vmul.f32 %v35, %v35
    %v656 = vmul.f32 %v36, %v36
    %v657 = vmul.f32 %v37, %v37
    %v658 = vmul.f32 %v38, %v38
    %v659 = vmul.f32 %v39, %v39
    %v660 = vmul.f32 %v40, %v40
    %v661 = vmul.f32 %v41, %v41
    %v662 = vmul.f32 %v42, %v42
    %v663 = vmul.f32 %v43, %v43
    %v664 = vmul.f32 %v44, %v44
    %v665 = vmul.f32 %v45, %v45
    %v666 = vmul.f32 %v46, %v46
    %v667 = vmul.f32 %v47, %v47
    %v668 = vmul.f32 %v48, %v48
    %v669 = vmul.f32 %v49, %v49
    %v670 = vmul.f32 %v50, %v50
    %v671 = vadd.f32 %v655, %v656
    %v672 = vrot.slane %v671, 4
    %v673 = vadd.f32 %v671, %v672
    %v674 = vrot.slane %v673, 2
    %v675 = vadd.f32 %v673, %v674
    %v676 = vrot.slane %v675, 1
    %v677 = vadd.f32 %v675, %v676
    %v678 = vadd.f32 %v657, %v658
    %v679 = vrot.slane %v678, 4
    %v680 = vadd.f32 %v678, %v679
    %v681 = vrot.slane %v680, 2
    %v682 = vadd.f32 %v680, %v681
    %v683 = vrot.slane %v682, 1
    %v684 = vadd.f32 %v682, %v683
    %v685 = vadd.f32 %v659, %v660
    %v686 = vrot.slane %v685, 4
    %v687 = vadd.f32 %v685, %v686
    %v688 = vrot.slane %v687, 2
    %v689 = vadd.f32 %v687, %v688
    %v690 = vrot.slane %v689, 1
    %v691 = vadd.f32 %v689, %v690
    %v692 = vadd.f32 %v661, %v662
    %v693 = vrot.slane %v692, 4
    %v694 = vadd.f32 %v692, %v693
    %v695 = vrot.slane %v694, 2
    %v696 = vadd.f32 %v694, %v695
    %v697 = vrot.slane %v696, 1
    %v698 = vadd.f32 %v696, %v697
    %v699 = vadd.f32 %v663, %v664
    %v700 = vrot.slane %v699, 4
    %v701 = vadd.f32 %v699, %v700
    %v702 = vrot.slane %v701, 2
    %v703 = vadd.f32 %v701, %v702
    %v704 = vrot.slane %v703, 1
    %v705 = vadd.f32 %v703, %v704
    %v706 = vadd.f32 %v665, %v666
    %v707 = vrot.slane %v706, 4
    %v708 = vadd.f32 %v706, %v707
    %v709 = vrot.slane %v708, 2
    %v710 = vadd.f32 %v708, %v709
    %v711 = vrot.slane %v710, 1
    %v712 = vadd.f32 %v710, %v711
    %v713 = vadd.f32 %v667, %v668
    %v714 = vrot.slane %v713, 4
    %v715 = vadd.f32 %v713, %v714
    %v716 = vrot.slane %v715, 2
    %v717 = vadd.f32 %v715, %v716
    %v718 = vrot.slane %v717, 1
    %v719 = vadd.f32 %v717, %v718
    %v720 = vadd.f32 %v669, %v670
    %v721 = vrot.slane %v720, 4
    %v722 = vadd.f32 %v720, %v721
    %v723 = vrot.slane %v722, 2
    %v724 = vadd.f32 %v722, %v723
    %v725 = vrot.slane %v724, 1
    %v726 = vadd.f32 %v724, %v725
    %728 = vset.pattern.permute.xlu0 0
    %729 = vperm.xlu0 %728, %v62
    %v730 = vpop.permute.xlu0 %729
    %733 = vset.pattern.permute.xlu0 0
    %734 = vperm.xlu0 %733, %v63
    %v735 = vpop.permute.xlu0 %734
    %738 = vset.pattern.permute.xlu0 0
    %739 = vperm.xlu0 %738, %v64
    %v740 = vpop.permute.xlu0 %739
    %743 = vset.pattern.permute.xlu0 0
    %744 = vperm.xlu0 %743, %v65
    %v745 = vpop.permute.xlu0 %744
    %748 = vset.pattern.permute.xlu0 0
    %749 = vperm.xlu0 %748, %v66
    %v750 = vpop.permute.xlu0 %749
    %753 = vset.pattern.permute.xlu0 0
    %754 = vperm.xlu0 %753, %v67
    %v755 = vpop.permute.xlu0 %754
    %758 = vset.pattern.permute.xlu0 0
    %759 = vperm.xlu0 %758, %v68
    %v760 = vpop.permute.xlu0 %759
    %763 = vset.pattern.permute.xlu0 0
    %764 = vperm.xlu0 %763, %v69
    %v765 = vpop.permute.xlu0 %764
    %v767 = vadd.f32 %v677, %v730
    %v768 = vadd.f32 %v684, %v735
    %v769 = vadd.f32 %v691, %v740
    %v770 = vadd.f32 %v698, %v745
    %v771 = vadd.f32 %v705, %v750
    %v772 = vadd.f32 %v712, %v755
    %v773 = vadd.f32 %v719, %v760
    %v774 = vadd.f32 %v726, %v765
    %v775 = vmul.f32 %v141, 2.0
    %v776 = vmul.f32 %v214, 2.0
    %v777 = vmul.f32 %v287, 2.0
    %v778 = vmul.f32 %v360, 2.0
    %v779 = vmul.f32 %v433, 2.0
    %v780 = vmul.f32 %v506, 2.0
    %v781 = vmul.f32 %v579, 2.0
    %v782 = vmul.f32 %v652, 2.0
    %v783 = vsub.f32 %v767, %v775
    %v784 = vsub.f32 %v768, %v776
    %v785 = vsub.f32 %v769, %v777
    %v786 = vsub.f32 %v770, %v778
    %v787 = vsub.f32 %v771, %v779
    %v788 = vsub.f32 %v772, %v780
    %v789 = vsub.f32 %v773, %v781
    %v790 = vsub.f32 %v774, %v782
    %v791 = vmax.f32 %v783, 0.0
    %v792 = vmax.f32 %v784, 0.0
    %v793 = vmax.f32 %v785, 0.0
    %v794 = vmax.f32 %v786, 0.0
    %v795 = vmax.f32 %v787, 0.0
    %v796 = vmax.f32 %v788, 0.0
    %v797 = vmax.f32 %v789, 0.0
    %v798 = vmax.f32 %v790, 0.0
    %v799 = vld [vmem:[#allocation5] sm:$0xff]
    %v800 = vrsqrt.pop %v791
    %v801 = vmul.f32 %v791, %v800
    %vm802 = vcmp.eq.f32.partialorder %v791, inf
    %v803 = vsel %vm802, %v791, %v801
    %vm804 = vcmp.eq.f32.partialorder %v791, 0.0
    %v805 = vand.u32 %v791, 2147483648
    %v806 = vsel %vm804, %v805, %v803
    %v807 = vrsqrt.pop %v792
    %v808 = vmul.f32 %v792, %v807
    %vm809 = vcmp.eq.f32.partialorder %v792, inf
    %v810 = vsel %vm809, %v792, %v808
    %vm811 = vcmp.eq.f32.partialorder %v792, 0.0
    %v812 = vand.u32 %v792, 2147483648
    %v813 = vsel %vm811, %v812, %v810
    %v814 = vrsqrt.pop %v793
    %v815 = vmul.f32 %v793, %v814
    %vm816 = vcmp.eq.f32.partialorder %v793, inf
    %v817 = vsel %vm816, %v793, %v815
    %vm818 = vcmp.eq.f32.partialorder %v793, 0.0
    %v819 = vand.u32 %v793, 2147483648
    %v820 = vsel %vm818, %v819, %v817
    %v821 = vrsqrt.pop %v794
    %v822 = vmul.f32 %v794, %v821
    %vm823 = vcmp.eq.f32.partialorder %v794, inf
    %v824 = vsel %vm823, %v794, %v822
    %vm825 = vcmp.eq.f32.partialorder %v794, 0.0
    %v826 = vand.u32 %v794, 2147483648
    %v827 = vsel %vm825, %v826, %v824
    %v828 = vrsqrt.pop %v795
    %v829 = vmul.f32 %v795, %v828
    %vm830 = vcmp.eq.f32.partialorder %v795, inf
    %v831 = vsel %vm830, %v795, %v829
    %vm832 = vcmp.eq.f32.partialorder %v795, 0.0
    %v833 = vand.u32 %v795, 2147483648
    %v834 = vsel %vm832, %v833, %v831
    %v835 = vrsqrt.pop %v796
    %v836 = vmul.f32 %v796, %v835
    %vm837 = vcmp.eq.f32.partialorder %v796, inf
    %v838 = vsel %vm837, %v796, %v836
    %vm839 = vcmp.eq.f32.partialorder %v796, 0.0
    %v840 = vand.u32 %v796, 2147483648
    %v841 = vsel %vm839, %v840, %v838
    %v842 = vrsqrt.pop %v797
    %v843 = vmul.f32 %v797, %v842
    %vm844 = vcmp.eq.f32.partialorder %v797, inf
    %v845 = vsel %vm844, %v797, %v843
    %vm846 = vcmp.eq.f32.partialorder %v797, 0.0
    %v847 = vand.u32 %v797, 2147483648
    %v848 = vsel %vm846, %v847, %v845
    %v849 = vrsqrt.pop %v798
    %v850 = vmul.f32 %v798, %v849
    %vm851 = vcmp.eq.f32.partialorder %v798, inf
    %v852 = vsel %vm851, %v798, %v850
    %vm853 = vcmp.eq.f32.partialorder %v798, 0.0
    %v854 = vand.u32 %v798, 2147483648
    %v855 = vsel %vm853, %v854, %v852
    %v856 = vadd.f32 %v806, %v813
    %v857 = vadd.f32 %v856, %v820
    %v858 = vadd.f32 %v857, %v827
    %v859 = vadd.f32 %v858, %v834
    %v860 = vadd.f32 %v859, %v841
    %v861 = vadd.f32 %v860, %v848
    %v862 = vadd.f32 %v861, %v855
    %v863 = vadd.f32 %v799, %v862
    %864 = vst [vmem:[#allocation5] sm:$0xff] %v863
    // Predicated region
    $region22: #{tpu_custom_call.1} parent=1 // pred_check
      %p865 = pneg %p29
    $region23: #{tpu_custom_call.1} parent=1 // pred_check_branch
      %867 = sbr.rel (%p865) target = $region25
    $region24: #{tpu_custom_call.1} parent=1 // pred_region
      %v868 = vld [vmem:[#allocation5] sm:$0xff]
      %v869 = vmul.f32 %v868, %v868
      %v870 = vmul.f32 %v869, 0.5
      %v871 = vadd.f32 %v870, 1.0
      %v872 = vrcp.pop %v871
      %v873 = vmul.f32 %v871, %v872
      %v874 = vsub.f32 2.0, %v873
      %v875 = vmul.f32 %v872, %v874
      %v876 = vmul.f32 %v875, %v875
      %v877 = vmul.f32 %v876, %v875
      %v878 = vlaneseq
      %v879 = vshrl.u32 %v878, 7
      %vm880 = vcmp.lt.s32.totalorder %v879, 4
      %v881 = vsel %vm880, %v877, 0.0
      %v882 = vrot.slane %v881, 4
      %v883 = vadd.f32 %v881, %v882
      %v884 = vrot.slane %v883, 2
      %v885 = vadd.f32 %v883, %v884
      %v886 = vrot.slane %v885, 1
      %v887 = vadd.f32 %v885, %v886
      %v888 = vrcp.pop %v887
      %v889 = vmul.f32 %v887, %v888
      %v890 = vsub.f32 2.0, %v889
      %v891 = vmul.f32 %v888, %v890
      %v892 = vmul.f32 %v881, %v891
      %893 = vst [vmem:[#allocation5] sm:$0xff] %v892
    $region25: #{tpu_custom_call.1} parent=1 // pred_fallthru
      _
    // Predicated region
    $region26: #{tpu_custom_call.1} parent=1 // pred_check
      _
    $region27: #{tpu_custom_call.1} parent=1 // pred_check_branch
      %895 = sbr.rel (0) target = $region29
    $region28: #{tpu_custom_call.1} parent=1 // pred_region
      %s897 = ssub.s32 128, 128
      %898 = vsyncadd [#allocation4], %s897
      %s900 = sshll.u32 [#allocation5], 4
      %s901 = int_to_ptr.vmem [resolvable:$true] %s900
      %903 = dma.vmem_to_hbm [thread:$0]  %s901, 128, %s3, [#allocation4]
    $region29: #{tpu_custom_call.1} parent=1 // pred_fallthru
      _
    // Predicated region
    $region30: #{tpu_custom_call.1} parent=1 // pred_check
      _
    $region31: #{tpu_custom_call.1} parent=1 // pred_check_branch
      %905 = sbr.rel (0) target = $region33
    $region32: #{tpu_custom_call.1} parent=1 // pred_region
      %906 = dma.done [#allocation4], 128
    $region33: #{tpu_custom_call.1} parent=1 // pred_fallthru
      _
    %907 = vsyncpa [#allocation3], 1
    %908 = vsyncpa [#allocation4], 1

</llo_original>
